<compile_context>
chip_gen: v7x
topology: tpu7x:2x2x1
jax: 0.10.0
libtpu: 0.0.40
codegen_flags: <defaults>
</compile_context>

<pallas_src>
import functools
import math

import jax
import jax.numpy as jnp
from jax.experimental import pallas as pl
from jax.experimental.pallas import tpu as pltpu


# ----------------------------------------------------------------------------
# Parameter ("buffer") construction — deterministic, mirrors __init__
# ----------------------------------------------------------------------------
def make_positional_encoding_table(max_len: int, dim: int) -> jnp.ndarray:
    """pe[pos, 2i]   = sin(pos * exp(-2i * ln(10000)/dim))
       pe[pos, 2i+1] = cos(pos * exp(-2i * ln(10000)/dim))   shape (max_len, dim)"""
    position = jnp.arange(0, max_len, dtype=jnp.float32)[:, None]            # (L, 1)
    div_term = jnp.exp(jnp.arange(0, dim, 2, dtype=jnp.float32)
                       * -(math.log(10000.0) / dim))                         # (dim/2,)
    angles = position * div_term                                             # (L, dim/2)
    pe = jnp.zeros((max_len, dim), dtype=jnp.float32)
    pe = pe.at[:, 0::2].set(jnp.sin(angles))
    pe = pe.at[:, 1::2].set(jnp.cos(angles))
    return pe


# ----------------------------------------------------------------------------
# Kernels (lane-dense 2-D blocks: emb (ts, B*D), pe (ts, D))
# ----------------------------------------------------------------------------
def _broadcast_pe(pe_tile, batch):
    # pe_tile: (ts, D) -> (ts, B*D), column b*D + d holds pe[s, d]
    if batch > 1:
        pe_tile = jnp.concatenate([pe_tile] * batch, axis=-1)
    return pe_tile


def _pe_kernel_eval(emb_ref, pe_ref, out_ref, *, scale, batch):
    pe_b = _broadcast_pe(pe_ref[...], batch)
    out_ref[...] = (emb_ref[...] * scale + pe_b).astype(out_ref.dtype)


def _pe_kernel_train(emb_ref, pe_ref, bits_ref, out_ref, *, scale, batch,
                     keep_threshold, inv_keep):
    pe_b = _broadcast_pe(pe_ref[...], batch)
    x = emb_ref[...] * scale + pe_b
    # Integer-threshold inverted dropout: P(drop) = keep_threshold / 2^32 = p
    keep = bits_ref[...] >= jnp.uint32(keep_threshold)
    out_ref[...] = jnp.where(keep, x * inv_keep, 0.0).astype(out_ref.dtype)


# ----------------------------------------------------------------------------
# Tiling heuristic: ~1 MiB emb block, multiple-of-8 sublane rows
# ----------------------------------------------------------------------------
def _pick_seq_tile(seq_len, row_bytes, target_bytes=1 << 20):
    want = target_bytes // max(row_bytes, 1)
    if want >= seq_len or seq_len <= 8:
        return seq_len
    ts = min(want, seq_len)
    ts -= ts % 8
    while ts >= 8:
        if seq_len % ts == 0:
            return ts
        ts -= 8
    return seq_len  # no (8,128)-friendly divisor below target: stream full seq


# ----------------------------------------------------------------------------
# Wrapper
# ----------------------------------------------------------------------------
def positional_encoding_forward(emb, pe_table, *, dim, dropout_p=0.0,
                                training=False, rng_key=None, seq_tile=None):
    """emb: (S, B, D); pe_table: (max_len, D) float32."""
    S, B, D = emb.shape
    assert D == dim
    assert pe_table.shape[0] >= S and pe_table.shape[1] == D

    pe = pe_table[:S].astype(emb.dtype)          # (S, D), same dtype as emb (bf16-safe)
    emb2d = emb.reshape(S, B * D)                # free reshape -> lane-dense layout

    ts = seq_tile if seq_tile is not None else _pick_seq_tile(
        S, B * D * emb.dtype.itemsize)
    assert S % ts == 0, "seq_len must be divisible by seq_tile"
    grid = (S // ts,)

    scale = math.sqrt(dim)
    use_dropout = training and dropout_p > 0.0

    emb_spec = pl.BlockSpec((ts, B * D), lambda i: (i, 0))
    pe_spec = pl.BlockSpec((ts, D), lambda i: (i, 0))
    out_spec = pl.BlockSpec((ts, B * D), lambda i: (i, 0))
    out_shape = jax.ShapeDtypeStruct((S, B * D), emb.dtype)
    cparams = pltpu.CompilerParams(dimension_semantics=("parallel",))

    if use_dropout:
        if rng_key is None:
            raise ValueError("rng_key is required when training with dropout_p > 0")
        keep_threshold = min(int(round(dropout_p * 2.0 ** 32)), 2 ** 32 - 1)
        bits = jax.random.bits(rng_key, (S, B * D), dtype=jnp.uint32)
        kernel = functools.partial(_pe_kernel_train, scale=scale, batch=B,
                                   keep_threshold=keep_threshold,
                                   inv_keep=1.0 / (1.0 - dropout_p))
        out2d = pl.pallas_call(
            kernel,
            out_shape=out_shape,
            grid=grid,
            in_specs=[emb_spec, pe_spec,
                      pl.BlockSpec((ts, B * D), lambda i: (i, 0))],
            out_specs=out_spec,
            compiler_params=cparams,
        )(emb2d, pe, bits)
    else:
        kernel = functools.partial(_pe_kernel_eval, scale=scale, batch=B)
        out2d = pl.pallas_call(
            kernel,
            out_shape=out_shape,
            grid=grid,
            in_specs=[emb_spec, pe_spec],
            out_specs=out_spec,
            compiler_params=cparams,
        )(emb2d, pe)

    return out2d.reshape(S, B, D)


# ----------------------------------------------------------------------------
# Demo / self-check
# ----------------------------------------------------------------------------
if __name__ == "__main__":
    SEQ, BATCH, DIM = 8, 2, 32
    MAX_LEN = 64
    DROPOUT_P = 0.1

    key = jax.random.PRNGKey(0)
    k_emb, k_drop = jax.random.split(key)
    emb = jax.random.normal(k_emb, (SEQ, BATCH, DIM), dtype=jnp.float32)

    pe_table = make_positional_encoding_table(MAX_LEN, DIM)
    ref = emb * math.sqrt(DIM) + pe_table[:SEQ][:, None, :]

    # --- eval mode (dropout = identity), must match the pure-JAX reference ---
    out_eval = positional_encoding_forward(
        emb, pe_table, dim=DIM, dropout_p=DROPOUT_P, training=False)
    out_eval = jax.block_until_ready(out_eval)
    assert out_eval.shape == (SEQ, BATCH, DIM)
    assert jnp.allclose(out_eval, ref, atol=1e-5, rtol=1e-5), "eval-mode mismatch"

    # --- training mode (stochastic inverted dropout) --------------------------
    out_train = positional_encoding_forward(
        emb, pe_table, dim=DIM, dropout_p=DROPOUT_P, training=True, rng_key=k_drop)
    out_train = jax.block_until_ready(out_train)
    assert out_train.shape == (SEQ, BATCH, DIM)
    # surviving elements are either 0 (dropped) or ref / (1 - p)
    nz = out_train != 0.0
    assert jnp.allclose(jnp.where(nz, out_train, 0.0),
                        jnp.where(nz, ref / (1.0 - DROPOUT_P), 0.0),
                        atol=1e-4, rtol=1e-4), "training-mode scaling mismatch"

    print("KERNEL_OK")
</pallas_src>

<mosaic_0001>
module attributes {stable_mosaic.version = 11 : i64} {
  func.func @_pe_kernel_eval(%arg0: i32, %arg1: memref<8x64xf32, #tpu.memory_space<vmem>>, %arg2: memref<8x32xf32, #tpu.memory_space<vmem>>, %arg3: memref<8x64xf32, #tpu.memory_space<vmem>>) attributes {dimension_semantics = [#tpu.dimension_semantics<parallel>], iteration_bounds = array<i64: 1>, scalar_prefetch = 0 : i64, scratch_operands = 0 : i64, tpu.core_type = #tpu.core_type<tc>, window_params = [{transform_indices = @transform_0, window_bounds = array<i64: 8, 64>}, {transform_indices = @transform_1, window_bounds = array<i64: 8, 32>}, {transform_indices = @transform_2, window_bounds = array<i64: 8, 64>}]} {
    %c0 = arith.constant 0 : index
    %c0_0 = arith.constant 0 : index
    %0 = vector.load %arg2[%c0, %c0_0] : memref<8x32xf32, #tpu.memory_space<vmem>>, vector<8x32xf32>
    %1 = tpu.concatenate %0, %0 in 1 : vector<8x32xf32>, vector<8x32xf32> -> vector<8x64xf32>
    %c0_1 = arith.constant 0 : index
    %c0_2 = arith.constant 0 : index
    %2 = vector.load %arg1[%c0_1, %c0_2] : memref<8x64xf32, #tpu.memory_space<vmem>>, vector<8x64xf32>
    %cst = arith.constant 5.65685415 : f32
    %3 = vector.broadcast %cst : f32 to vector<8x64xf32>
    %4 = arith.mulf %2, %3 : vector<8x64xf32>
    %5 = arith.addf %4, %1 : vector<8x64xf32>
    %c0_3 = arith.constant 0 : index
    %c0_4 = arith.constant 0 : index
    %6 = vector.load %arg3[%c0_3, %c0_4] : memref<8x64xf32, #tpu.memory_space<vmem>>, vector<8x64xf32>
    tpu.vector_store %arg3[%c0_3, %c0_4], %5 {strides = array<i32>} : memref<8x64xf32, #tpu.memory_space<vmem>>, vector<8x64xf32>,
    return
  }
  func.func @transform_0(%arg0: i32) -> (i32, i32) {
    %c0_i32 = arith.constant 0 : i32
    %c0_i32_0 = arith.constant 0 : i32
    return %arg0, %c0_i32 : i32, i32
  }
  func.func @transform_1(%arg0: i32) -> (i32, i32) {
    %c0_i32 = arith.constant 0 : i32
    %c0_i32_0 = arith.constant 0 : i32
    return %arg0, %c0_i32 : i32, i32
  }
  func.func @transform_2(%arg0: i32) -> (i32, i32) {
    %c0_i32 = arith.constant 0 : i32
    %c0_i32_0 = arith.constant 0 : i32
    return %arg0, %c0_i32 : i32, i32
  }
}

</mosaic_0001>

<llo_original>
// kernel: tpu_custom_call.1
$region0: #{tpu_custom_call.1}
  #allocation0 [shape = 'u32[]', space=smem, size = 0x4, offset = 0x4, fixed_abs, tag = 'smem constant byte address 0x4 - core index']
  #allocation1 [shape = 'u32[144,128]{1,0:T(1,128)}', space=vmem, size = 0x12000, scoped, tag = 'internal scratch']
  %s0 = inlined_call_operand.hbm [shape: f32[8,64], index: 0, kind: input, shape index: {}]
  %s1 = inlined_call_operand.hbm [shape: f32[8,32], index: 1, kind: input, shape index: {}]
  %s2 = inlined_call_operand.hbm [shape: f32[8,64], index: 2, kind: output, shape index: {}]
  %s3 = sld [smem:[#allocation0]]
  $region26: #{tpu_custom_call.1} parent=0
    _
  %s5 = ssub.s32 1, %s3
  %s6 = scalar_select 0, %s5, %s3
  $region1: #{tpu_custom_call.1} parent=0
    #allocation2 [shape = 'u8[4096]{0}', space=vmem, size = 0x1000, scoped, tag = 'input window, operand 0, single buffered']
    #allocation3 [shape = 's32[1]{0}', space=sflag, size = 0x4, scoped, tag = 'scoped memory for tpu_custom_call.1']
    #allocation4 [shape = 's32[1]{0}', space=sflag, size = 0x4, scoped, tag = 'scoped memory for tpu_custom_call.1']
    #allocation5 [shape = 'u8[4096]{0}', space=vmem, size = 0x1000, scoped, tag = 'input window, operand 1, single buffered']
    #allocation6 [shape = 's32[1]{0}', space=sflag, size = 0x4, scoped, tag = 'scoped memory for tpu_custom_call.1']
    #allocation7 [shape = 'u8[4096]{0}', space=vmem, size = 0x1000, scoped, tag = 'output window, operand 0, single buffered']
    %7 = vsyncpa [#allocation3], 0
    %8 = vsyncpa [#allocation6], 0
    %9 = vsyncpa [#allocation4], 0
    // Predicated region
    $region2: #{tpu_custom_call.1} parent=1 // pred_check
      _
    $region3: #{tpu_custom_call.1} parent=1 // pred_check_branch
      %11 = sbr.rel (0) target = $region5
    $region4: #{tpu_custom_call.1} parent=1 // pred_region
      %s13 = ssub.s32 128, 128
      %14 = vsyncadd [#allocation3], %s13
      %s16 = sshll.u32 [#allocation2], 4
      %s17 = int_to_ptr.vmem [resolvable:$true] %s16
      %19 = dma.hbm_to_vmem [thread:$0]  %s0, 128, %s17, [#allocation3]
    $region5: #{tpu_custom_call.1} parent=1 // pred_fallthru
      _
    // Predicated region
    $region6: #{tpu_custom_call.1} parent=1 // pred_check
      _
    $region7: #{tpu_custom_call.1} parent=1 // pred_check_branch
      %21 = sbr.rel (0) target = $region9
    $region8: #{tpu_custom_call.1} parent=1 // pred_region
      %s23 = ssub.s32 128, 128
      %24 = vsyncadd [#allocation6], %s23
      %s26 = sshll.u32 [#allocation5], 4
      %s27 = int_to_ptr.vmem [resolvable:$true] %s26
      %29 = dma.hbm_to_vmem [thread:$0]  %s1, 128, %s27, [#allocation6]
    $region9: #{tpu_custom_call.1} parent=1 // pred_fallthru
      _
    // Predicated region
    $region10: #{tpu_custom_call.1} parent=1 // pred_check
      _
    $region11: #{tpu_custom_call.1} parent=1 // pred_check_branch
      %31 = sbr.rel (0) target = $region13
    $region12: #{tpu_custom_call.1} parent=1 // pred_region
      %32 = dma.done [#allocation3], 128
    $region13: #{tpu_custom_call.1} parent=1 // pred_fallthru
      _
    // Predicated region
    $region14: #{tpu_custom_call.1} parent=1 // pred_check
      _
    $region15: #{tpu_custom_call.1} parent=1 // pred_check_branch
      %34 = sbr.rel (0) target = $region17
    $region16: #{tpu_custom_call.1} parent=1 // pred_region
      %35 = dma.done [#allocation6], 128
    $region17: #{tpu_custom_call.1} parent=1 // pred_fallthru
      _
    %v36 = vld [vmem:[#allocation5] sm:$0xff]
    %38 = vrot.lane.b32.xlu0 %v36, 32
    %v39 = vpop.permute.xlu0 %38
    %vm41 = vcmask 261120
    %v42 = vsel %vm41, %v36, %v39
    %v43 = vld [vmem:[#allocation2] sm:$0xff]
    %v44 = vmul.f32 %v43, 5.656854
    %v45 = vadd.f32 %v44, %v42
    %vm46 = vcmask 523264
    %47 = vst.msk [vmem:[#allocation7] sm:$0xff] %vm46, %v45
    // Predicated region
    $region18: #{tpu_custom_call.1} parent=1 // pred_check
      _
    $region19: #{tpu_custom_call.1} parent=1 // pred_check_branch
      %49 = sbr.rel (0) target = $region21
    $region20: #{tpu_custom_call.1} parent=1 // pred_region
      %s51 = ssub.s32 128, 128
      %52 = vsyncadd [#allocation4], %s51
      %s54 = sshll.u32 [#allocation7], 4
      %s55 = int_to_ptr.vmem [resolvable:$true] %s54
      %57 = dma.vmem_to_hbm [thread:$0]  %s55, 128, %s2, [#allocation4]
    $region21: #{tpu_custom_call.1} parent=1 // pred_fallthru
      _
    // Predicated region
    $region22: #{tpu_custom_call.1} parent=1 // pred_check
      _
    $region23: #{tpu_custom_call.1} parent=1 // pred_check_branch
      %59 = sbr.rel (0) target = $region25
    $region24: #{tpu_custom_call.1} parent=1 // pred_region
      %60 = dma.done [#allocation4], 128
    $region25: #{tpu_custom_call.1} parent=1 // pred_fallthru
      _
    %61 = vsyncpa [#allocation3], 1
    %62 = vsyncpa [#allocation6], 1
    %63 = vsyncpa [#allocation4], 1

</llo_original>
